<compile_context>
chip_gen: v5e
topology: v5e:2x2
jax: 0.10.0
libtpu: 0.0.40
codegen_flags: <defaults>
</compile_context>

<pallas_src>
import functools
import math

import jax
import jax.numpy as jnp
from jax.experimental import pallas as pl
from jax.experimental.pallas import tpu as pltpu


def _cdiv(a, b):
    return -(-a // b)


def _round_up(x, m):
    return ((x + m - 1) // m) * m


def _abs_pow(diff, p):
    """|diff| ** p on the full streamed tile; avoid EUP pow for integer p."""
    if p == 1:
        return jnp.abs(diff)
    if p == 2:
        return diff * diff
    if p == 3:
        ad = jnp.abs(diff)
        return ad * ad * ad
    if p == 4:
        sq = diff * diff
        return sq * sq
    # TODO(synk): general non-integer p needs pow (exp+log) on the EUP.
    return jnp.abs(diff) ** p


def _root(s, p):
    """s ** (1/p), applied only to the small (tile_r, k) segment sums."""
    if p == 1:
        return s
    if p == 2:
        return jnp.sqrt(s)
    if p == 4:
        return jnp.sqrt(jnp.sqrt(s))
    return s ** (1.0 / p)


def _align_kernel_packed(e1_ref, e2_ref, masks_ref, out_ref, *, p):
    # e1/e2 : (tile_r, W) lane-dense packed blocks (k original rows per packed row)
    # masks : (W, k) 0/1 segment-membership matrix (constant block -> resident)
    # out   : (tile_r, k) -> -||e1 - e2||_p per original row
    diff = e1_ref[...].astype(jnp.float32) - e2_ref[...].astype(jnp.float32)
    a = _abs_pow(diff, p)
    # Segmented reduce on the MXU; each output row depends only on its own
    # input row, so stale rows of a partial last block stay confined to rows
    # that are masked on store.
    seg = jnp.dot(a, masks_ref[...], preferred_element_type=jnp.float32)
    out_ref[...] = (-_root(seg, p)).astype(out_ref.dtype)


def _align_kernel_plain(e1_ref, e2_ref, out_ref, *, p):
    # e1/e2 : (tile_r, D) blocks;  out : (tile_r, 1)
    diff = e1_ref[...].astype(jnp.float32) - e2_ref[...].astype(jnp.float32)
    a = _abs_pow(diff, p)
    s = jnp.sum(a, axis=-1, keepdims=True)
    out_ref[...] = (-_root(s, p)).astype(out_ref.dtype)


def _choose_packing(n, d):
    """Original rows per lane-dense packed row (k*d is a multiple of 128).

    Packing is only used when it needs NO data movement (n % k == 0).  Odd /
    awkward d (k would exceed 32) or a ragged n fall back to the unpacked
    path, which is still zero-copy."""
    k = 128 // math.gcd(d, 128)
    if k == 1 or k > 32 or n % k != 0:
        return 1
    return k


def _choose_tile_rows(w, itemsize, sub, target_vmem_block_bytes=4 * 1024 * 1024):
    """Rows per block, sized by the block's VMEM footprint (lanes pad to 128)."""
    w_pad = _round_up(w, 128)
    rows = target_vmem_block_bytes // (w_pad * itemsize)
    return max(sub, (rows // sub) * sub)


def align_forward(e1, e2, p=2, tile_rows=None):
    """Computes -||e1 - e2||_p along axis 1.  e1, e2: (N, D)."""
    e1 = jnp.asarray(e1)
    e2 = jnp.asarray(e2)
    assert e1.shape == e2.shape and e1.ndim == 2
    if isinstance(p, float) and float(p).is_integer():
        p = int(p)
    assert p > 0, "only finite p > 0 is supported"

    N, D = e1.shape
    in_dtype = e1.dtype
    out_dtype = in_dtype if jnp.issubdtype(in_dtype, jnp.floating) else jnp.float32
    itemsize = jnp.dtype(in_dtype).itemsize
    sub = max(8, 32 // max(1, itemsize))      # sublane row packing: 8/16/32 for 4/2/1B

    k = _choose_packing(N, D)
    W = k * D
    R = N // k                                # packed rows (k == 1 -> R == N)

    # Free contiguous reshapes -- no padding, no slicing, no extra HBM traffic.
    e1v = e1.reshape(R, W)
    e2v = e2.reshape(R, W)

    # ---- Tiling: balanced tiles, >= 2 grid steps when there is enough data
    #      (v7x has 2 TensorCores), partial last block allowed (masked store).
    if tile_rows is not None:
        tile_r = max(sub, (int(tile_rows) // sub) * sub)
    else:
        tile_r_max = _choose_tile_rows(W, itemsize, sub)
        g = _cdiv(R, tile_r_max)
        if g == 1 and R >= 2 * sub:
            g = 2                              # keep both v7x TensorCores busy
        tile_r = _round_up(_cdiv(R, max(1, g)), sub)
    if tile_r >= R:
        tile_r = R                             # single full-array block (always legal)
    grid = (_cdiv(R, tile_r),)

    cost = pl.CostEstimate(
        flops=int(3 * N * D + (2 * R * W * k if k > 1 else 0)),
        transcendentals=int((0 if p == 1 else R * k)
                            + (0 if p in (1, 2, 3, 4) else 2 * N * D)),
        bytes_accessed=int(2 * N * D * itemsize + N * jnp.dtype(out_dtype).itemsize),
    )
    cparams = pltpu.CompilerParams(
        dimension_semantics=("parallel",),
        # 2 inputs x 2 pipeline buffers x ~4 MiB blocks << 48 MiB; 48 MiB is
        # safe on every generation (v7x physical VMEM is 64 MiB).
        vmem_limit_bytes=48 * 1024 * 1024,
    )

    if k > 1:
        # masks_t[w, j] = 1 iff lane w belongs to original row j of a packed row.
        masks_t = jnp.repeat(jnp.eye(k, dtype=jnp.float32), D, axis=0)   # (W, k)
        out = pl.pallas_call(
            functools.partial(_align_kernel_packed, p=p),
            out_shape=jax.ShapeDtypeStruct((R, k), out_dtype),
            grid=grid,
            in_specs=[
                pl.BlockSpec((tile_r, W), lambda i: (i, 0)),
                pl.BlockSpec((tile_r, W), lambda i: (i, 0)),
                pl.BlockSpec((W, k), lambda i: (0, 0)),    # constant block -> resident
            ],
            out_specs=pl.BlockSpec((tile_r, k), lambda i: (i, 0)),
            compiler_params=cparams,
            cost_estimate=cost,
        )(e1v, e2v, masks_t)
    else:
        out = pl.pallas_call(
            functools.partial(_align_kernel_plain, p=p),
            out_shape=jax.ShapeDtypeStruct((R, 1), out_dtype),
            grid=grid,
            in_specs=[
                pl.BlockSpec((tile_r, W), lambda i: (i, 0)),
                pl.BlockSpec((tile_r, W), lambda i: (i, 0)),
            ],
            out_specs=pl.BlockSpec((tile_r, 1), lambda i: (i, 0)),
            compiler_params=cparams,
            cost_estimate=cost,
        )(e1v, e2v)

    return out.reshape(N)                      # (N,), matches torch.norm(dim=1)


if __name__ == "__main__":
    # Align(p) has no learned parameters; p is a plain hyperparameter.
    key = jax.random.PRNGKey(0)
    k1, k2, k3, k4 = jax.random.split(key, 4)

    # Main example: small entity-embedding shapes (batch=8, hidden=32).
    # Packed path (k=4, W=128), single full block, MXU segmented reduce.
    N, D = 8, 32
    e1 = jax.random.normal(k1, (N, D), dtype=jnp.float32)
    e2 = jax.random.normal(k2, (N, D), dtype=jnp.float32)
    pred = jax.block_until_ready(align_forward(e1, e2, p=2))
    ref = -jnp.linalg.norm(e1 - e2, ord=2, axis=1)
    assert pred.shape == (N,)
    assert jnp.allclose(pred, ref, atol=1e-5, rtol=1e-5)

    # Lane-aligned D (no packing, k=1) + multi-step pipelined grid.
    N2, D2 = 40, 256
    a = jax.random.normal(k3, (N2, D2), dtype=jnp.float32)
    b = jax.random.normal(k4, (N2, D2), dtype=jnp.float32)
    pred2 = jax.block_until_ready(align_forward(a, b, p=2, tile_rows=8))
    ref2 = -jnp.linalg.norm(a - b, ord=2, axis=1)
    assert jnp.allclose(pred2, ref2, atol=1e-5, rtol=1e-5)

    # Ragged N (not divisible by k) -> unpacked zero-copy fallback, and a
    # non-divisible grid whose partial last block is masked.  p = 1.
    pred3 = jax.block_until_ready(align_forward(a[:10, :32], b[:10, :32], p=1, tile_rows=8))
    ref3 = -jnp.linalg.norm(a[:10, :32] - b[:10, :32], ord=1, axis=1)
    assert jnp.allclose(pred3, ref3, atol=1e-5, rtol=1e-5)

    # Packed path with multiple grid steps, integer p=3 (no EUP pow on stream).
    N4, D4 = 64, 32
    c = jax.random.normal(k1, (N4, D4), dtype=jnp.float32)
    d = jax.random.normal(k2, (N4, D4), dtype=jnp.float32)
    pred4 = jax.block_until_ready(align_forward(c, d, p=3, tile_rows=8))
    ref4 = -jnp.linalg.norm(c - d, ord=3, axis=1)
    assert jnp.allclose(pred4, ref4, atol=1e-4, rtol=1e-4)

    print("KERNEL_OK")
</pallas_src>

<mosaic_0001>
module attributes {stable_mosaic.version = 11 : i64} {
  func.func @_align_kernel_packed(%arg0: i32, %arg1: memref<2x128xf32, #tpu.memory_space<vmem>>, %arg2: memref<2x128xf32, #tpu.memory_space<vmem>>, %arg3: memref<128x4xf32, #tpu.memory_space<vmem>>, %arg4: memref<2x4xf32, #tpu.memory_space<vmem>>) attributes {dimension_semantics = [#tpu.dimension_semantics<parallel>], iteration_bounds = array<i64: 1>, scalar_prefetch = 0 : i64, scratch_operands = 0 : i64, tpu.core_type = #tpu.core_type<tc>, window_params = [{transform_indices = @transform_0, window_bounds = array<i64: 2, 128>}, {transform_indices = @transform_1, window_bounds = array<i64: 2, 128>}, {pipeline_mode = #tpu.pipeline_mode<synchronous>, transform_indices = @transform_2, window_bounds = array<i64: 128, 4>}, {transform_indices = @transform_3, window_bounds = array<i64: 2, 4>}]} {
    %c0 = arith.constant 0 : index
    %c0_0 = arith.constant 0 : index
    %0 = vector.load %arg1[%c0, %c0_0] : memref<2x128xf32, #tpu.memory_space<vmem>>, vector<2x128xf32>
    %c0_1 = arith.constant 0 : index
    %c0_2 = arith.constant 0 : index
    %1 = vector.load %arg2[%c0_1, %c0_2] : memref<2x128xf32, #tpu.memory_space<vmem>>, vector<2x128xf32>
    %2 = arith.subf %0, %1 : vector<2x128xf32>
    %3 = arith.mulf %2, %2 : vector<2x128xf32>
    %c0_3 = arith.constant 0 : index
    %c0_4 = arith.constant 0 : index
    %4 = vector.load %arg3[%c0_3, %c0_4] : memref<128x4xf32, #tpu.memory_space<vmem>>, vector<128x4xf32>
    %cst = arith.constant dense<0.000000e+00> : vector<2x4xf32>
    %5 = tpu.matmul %3, %4, %cst {dimension_numbers = #tpu.dot_dimension_numbers<[1], [0], [0], [1], [0, 0, 1, 1], [], []>} : vector<2x128xf32>, vector<128x4xf32>, vector<2x4xf32> -> vector<2x4xf32>
    %6 = math.sqrt %5 : vector<2x4xf32>
    %cst_5 = arith.constant 0.000000e+00 : f32
    %7 = vector.broadcast %cst_5 : f32 to vector<2x4xf32>
    %8 = arith.subf %7, %6 : vector<2x4xf32>
    %c0_6 = arith.constant 0 : index
    %c0_7 = arith.constant 0 : index
    %9 = vector.load %arg4[%c0_6, %c0_7] : memref<2x4xf32, #tpu.memory_space<vmem>>, vector<2x4xf32>
    tpu.vector_store %arg4[%c0_6, %c0_7], %8 {strides = array<i32>} : memref<2x4xf32, #tpu.memory_space<vmem>>, vector<2x4xf32>,
    return
  }
  func.func @transform_0(%arg0: i32) -> (i32, i32) {
    %c0_i32 = arith.constant 0 : i32
    %c0_i32_0 = arith.constant 0 : i32
    return %arg0, %c0_i32 : i32, i32
  }
  func.func @transform_1(%arg0: i32) -> (i32, i32) {
    %c0_i32 = arith.constant 0 : i32
    %c0_i32_0 = arith.constant 0 : i32
    return %arg0, %c0_i32 : i32, i32
  }
  func.func @transform_2(%arg0: i32) -> (i32, i32) {
    %c0_i32 = arith.constant 0 : i32
    %c0_i32_0 = arith.constant 0 : i32
    %c0_i32_1 = arith.constant 0 : i32
    return %c0_i32, %c0_i32_0 : i32, i32
  }
  func.func @transform_3(%arg0: i32) -> (i32, i32) {
    %c0_i32 = arith.constant 0 : i32
    %c0_i32_0 = arith.constant 0 : i32
    return %arg0, %c0_i32 : i32, i32
  }
}

</mosaic_0001>

<llo_original>
// kernel: tpu_custom_call.1
$region0: #{tpu_custom_call.1}
  #allocation0 [shape = 'u32[]', space=smem, size = 0x4, offset = 0x4, fixed_abs, tag = 'smem constant byte address 0x4 - core index']
  #allocation1 [shape = 'u32[72,128]{1,0:T(1,128)}', space=vmem, size = 0x9000, scoped, tag = 'internal scratch']
  %s0 = inlined_call_operand.vmem [shape: f32[2,128], index: 0, kind: input, shape index: {}]
  %s1 = inlined_call_operand.vmem [shape: f32[2,128], index: 1, kind: input, shape index: {}]
  %s2 = inlined_call_operand.vmem [shape: f32[128,4], index: 2, kind: input, shape index: {}]
  %s3 = inlined_call_operand.hbm [shape: f32[2,4], index: 3, kind: output, shape index: {}]
  %s4 = sld [smem:[#allocation0]]
  $region22: #{tpu_custom_call.1} parent=0
    _
  %s6 = ssub.s32 1, %s4
  %s7 = scalar_select 0, %s6, %s4
  $region1: #{tpu_custom_call.1} parent=0
    #allocation2 [shape = 'u8[1024]{0}', space=vmem, size = 0x400, scoped, tag = 'output window, operand 0, single buffered']
    #allocation3 [shape = 's32[1]{0}', space=sflag, size = 0x4, scoped, tag = 'scoped memory for tpu_custom_call.1']
    %8 = vsyncpa [#allocation3], 0
    // Predicated region
    $region2: #{tpu_custom_call.1} parent=1 // pred_check
      _
    $region3: #{tpu_custom_call.1} parent=1 // pred_check_branch
      %10 = sbr.rel (0) target = $region5
    $region4: #{tpu_custom_call.1} parent=1 // pred_region
      _
    $region5: #{tpu_custom_call.1} parent=1 // pred_fallthru
      _
    // Predicated region
    $region6: #{tpu_custom_call.1} parent=1 // pred_check
      _
    $region7: #{tpu_custom_call.1} parent=1 // pred_check_branch
      %12 = sbr.rel (0) target = $region9
    $region8: #{tpu_custom_call.1} parent=1 // pred_region
      _
    $region9: #{tpu_custom_call.1} parent=1 // pred_fallthru
      _
    // Predicated region
    $region10: #{tpu_custom_call.1} parent=1 // pred_check
      _
    $region11: #{tpu_custom_call.1} parent=1 // pred_check_branch
      %14 = sbr.rel (0) target = $region13
    $region12: #{tpu_custom_call.1} parent=1 // pred_region
      _
    $region13: #{tpu_custom_call.1} parent=1 // pred_fallthru
      _
    %v15 = vld [vmem:[%s0] sm:$0x3]
    %v16 = vld [vmem:[%s1] sm:$0x3]
    %v17 = vsub.f32 %v15, %v16
    %v18 = vmul.f32 %v17, %v17
    %v19 = vld [vmem:[%s2] sm:$0xff]
    %v20 = vld [vmem:[%s2 + $0x8] sm:$0xff]
    %v21 = vld [vmem:[%s2 + $0x10] sm:$0xff]
    %v22 = vld [vmem:[%s2 + $0x18] sm:$0xff]
    %v23 = vld [vmem:[%s2 + $0x20] sm:$0xff]
    %v24 = vld [vmem:[%s2 + $0x28] sm:$0xff]
    %v25 = vld [vmem:[%s2 + $0x30] sm:$0xff]
    %v26 = vld [vmem:[%s2 + $0x38] sm:$0xff]
    %v27 = vld [vmem:[%s2 + $0x40] sm:$0xff]
    %v28 = vld [vmem:[%s2 + $0x48] sm:$0xff]
    %v29 = vld [vmem:[%s2 + $0x50] sm:$0xff]
    %v30 = vld [vmem:[%s2 + $0x58] sm:$0xff]
    %v31 = vld [vmem:[%s2 + $0x60] sm:$0xff]
    %v32 = vld [vmem:[%s2 + $0x68] sm:$0xff]
    %v33 = vld [vmem:[%s2 + $0x70] sm:$0xff]
    %v34 = vld [vmem:[%s2 + $0x78] sm:$0xff]
    %35 = vmatpush.msra.mxu0 %v34
    %36 = vmatpush.msra.mxu0 %v33
    %37 = vmatpush.msra.mxu0 %v32
    %38 = vmatpush.msra.mxu0 %v31
    %39 = vmatpush.msra.mxu0 %v30
    %40 = vmatpush.msra.mxu0 %v29
    %41 = vmatpush.msra.mxu0 %v28
    %42 = vmatpush.msra.mxu0 %v27
    %43 = vmatpush.msra.mxu0 %v26
    %44 = vmatpush.msra.mxu0 %v25
    %45 = vmatpush.msra.mxu0 %v24
    %46 = vmatpush.msra.mxu0 %v23
    %47 = vmatpush.msra.mxu0 %v22
    %48 = vmatpush.msra.mxu0 %v21
    %49 = vmatpush.msra.mxu0 %v20
    %50 = vmatpush.msra.mxu0 %v19
    %51 = vmatmul.f32.gmra.mxu0 %v18
    %v52 = vpop.f32.mrf.mxu0
    %v53 = vadd.f32 0.0, %v52
    %54 = vdwg.mxu0
    %v55 = vrsqrt.pop %v53
    %v56 = vmul.f32 %v55, %v53
    %v57 = vmul.f32 %v56, %v55
    %v58 = vmul.f32 0.5, %v57
    %v59 = vsub.f32 1.5, %v58
    %v60 = vmul.f32 %v55, %v59
    %v61 = vmul.f32 %v53, %v60
    %vm62 = vcmp.eq.f32.partialorder %v53, inf
    %v63 = vsel %vm62, %v53, %v61
    %vm64 = vcmp.eq.f32.partialorder %v53, 0.0
    %v65 = vand.u32 %v53, 2147483648
    %v66 = vsel %vm64, %v65, %v63
    %v67 = vsub.f32 0.0, %v66
    %vm68 = vcmask 25600
    %69 = vst.msk [vmem:[#allocation2] sm:$0x3] %vm68, %v67
    // Predicated region
    $region14: #{tpu_custom_call.1} parent=1 // pred_check
      _
    $region15: #{tpu_custom_call.1} parent=1 // pred_check_branch
      %71 = sbr.rel (0) target = $region17
    $region16: #{tpu_custom_call.1} parent=1 // pred_region
      %73 = vsyncadd [#allocation3], 0
      %s75 = sshll.u32 [#allocation2], 4
      %s76 = int_to_ptr.vmem [resolvable:$true] %s75
      %s77 = sshll.u32 %s3, 4
      %s78 = int_to_ptr.hbm [resolvable:$true] %s77
      %80 = dma.vmem_to_hbm [thread:$0]  %s76, 32, %s78, [#allocation3]
    $region17: #{tpu_custom_call.1} parent=1 // pred_fallthru
      _
    // Predicated region
    $region18: #{tpu_custom_call.1} parent=1 // pred_check
      _
    $region19: #{tpu_custom_call.1} parent=1 // pred_check_branch
      %82 = sbr.rel (0) target = $region21
    $region20: #{tpu_custom_call.1} parent=1 // pred_region
      %84 = dma.done [#allocation3], 32
    $region21: #{tpu_custom_call.1} parent=1 // pred_fallthru
      _
    %85 = vsyncpa [#allocation3], 1

</llo_original>
